<compile_context>
chip_gen: v7x
topology: tpu7x:2x2x1
jax: 0.10.0
libtpu: 0.0.40
codegen_flags: <defaults>
</compile_context>

<pallas_src>
import math

import jax
import jax.numpy as jnp
from jax.experimental import pallas as pl
from jax.experimental.pallas import tpu as pltpu


NEG_SLOPE = 0.01  # PyTorch nn.LeakyReLU default


def _p2d_kernel(pe_ref, dn_ref, wpe_ref, wdn_ref, b_ref, o_ref):
    # pe_ref: (TMg, G*P), dn_ref: (TMg, G*D)    -- lane-dense grouped row tiles
    # wpe_ref: (G*P, G*N), wdn_ref: (G*D, G*N)  -- block-diagonal, VMEM-resident
    # b_ref: (1, G*N) tiled bias, o_ref: (TMg, G*N)
    y = jnp.dot(pe_ref[...], wpe_ref[...], preferred_element_type=jnp.float32)
    y = y + jnp.dot(dn_ref[...], wdn_ref[...], preferred_element_type=jnp.float32)
    y = y + b_ref[...]
    y = jnp.where(y > 0, y, NEG_SLOPE * y)  # LeakyReLU
    o_ref[...] = y.astype(o_ref.dtype)


def _block_diag(w, g):
    """(K, N) -> (g*K, g*N) block-diagonal replication of w."""
    k, n = w.shape
    eye = jnp.eye(g, dtype=w.dtype)
    return (eye[:, None, :, None] * w[None, :, None, :]).reshape(g * k, g * n)


def p2d_agg(point_edge, distribution_node, w_t, bias, out_c, *,
            tile_m=4096, compute_dtype=None, out_dtype=None):
    """point_edge: (mb, ns, P), distribution_node: (mb, ns, D), w_t: (out_c + D, N)."""
    mb, ns, P = point_edge.shape
    D = distribution_node.shape[2]
    N = w_t.shape[1]
    assert w_t.shape[0] == out_c + D, "weight rows must equal out_c + dn feature dim"
    assert out_c <= P
    M = mb * ns

    in_dtype = compute_dtype if compute_dtype is not None else point_edge.dtype
    if out_dtype is None:
        out_dtype = in_dtype

    # ---- Lane-dense grouping: pack G consecutive rows per grouped row so the
    # output last dim becomes G*N (a multiple of 128 when possible).  G must
    # divide M so the reshapes below are free row-major views; degrade via gcd.
    G = math.gcd(M, 128 // math.gcd(128, N))
    # Keep the replicated block-diagonal weights small (they stay VMEM-resident).
    while G > 1 and G * G * (P + D) * N * 4 > (4 << 20):
        G //= 2  # G is a power of two that divides M, so G//2 still divides M
    Mg = M // G

    pe_g = point_edge.reshape(Mg, G * P).astype(in_dtype)      # free views; no concat in HBM
    dn_g = distribution_node.reshape(Mg, G * D).astype(in_dtype)

    # Fold concat + point_edge[:, :, :out_c] slice into the weight: per-group
    # pe weight rows past out_c are exactly zero.
    w_pe_full = jnp.zeros((P, N), w_t.dtype).at[:out_c, :].set(w_t[:out_c, :])
    w_pe_bd = _block_diag(w_pe_full, G).astype(in_dtype)        # (G*P, G*N)
    w_dn_bd = _block_diag(w_t[out_c:, :], G).astype(in_dtype)   # (G*D, G*N)
    b_g = jnp.tile(bias.astype(jnp.float32), G).reshape(1, G * N)

    # ---- Row tiling: align to the sublane granule; when possible use >= 2
    # blocks so dimension_semantics=("parallel",) can shard across v7x's 2 TCs.
    sub = 8 if min(jnp.dtype(in_dtype).itemsize, jnp.dtype(out_dtype).itemsize) >= 4 else 16
    cap = max(sub, (max(tile_m, 1) // max(G, 1)) // sub * sub)
    if Mg <= sub:
        TMg = Mg                                      # single full block (block == full dim)
    else:
        half = (((Mg + 1) // 2) + sub - 1) // sub * sub
        TMg = min(cap, half)
    grid = (pl.cdiv(Mg, TMg),)

    out = pl.pallas_call(
        _p2d_kernel,
        out_shape=jax.ShapeDtypeStruct((Mg, G * N), out_dtype),
        grid=grid,
        in_specs=[
            pl.BlockSpec((TMg, G * P), lambda i: (i, 0)),    # row-tiled grouped point_edge
            pl.BlockSpec((TMg, G * D), lambda i: (i, 0)),    # row-tiled grouped distribution_node
            pl.BlockSpec((G * P, G * N), lambda i: (0, 0)),  # block-diag weight: VMEM-resident
            pl.BlockSpec((G * D, G * N), lambda i: (0, 0)),  # block-diag weight: VMEM-resident
            pl.BlockSpec((1, G * N), lambda i: (0, 0)),      # tiled bias: VMEM-resident
        ],
        out_specs=pl.BlockSpec((TMg, G * N), lambda i: (i, 0)),
        compiler_params=pltpu.CompilerParams(
            dimension_semantics=("parallel",),   # shards row blocks across v7x's 2 TCs
            vmem_limit_bytes=32 << 20,           # few-MB usage; leave headroom on v7x
        ),
    )(pe_g, dn_g, w_pe_bd, w_dn_bd, b_g)

    # Grouped-row layout is plain row-major, so this is a free view.
    return out.reshape(mb, ns, N)


def _reference(point_edge, distribution_node, w_t, bias, out_c):
    x = jnp.concatenate([point_edge[:, :, :out_c], distribution_node], axis=2)
    mb, ns, _ = x.shape
    x = x.reshape(mb * ns, -1)
    y = x @ w_t + bias[None, :]
    y = jnp.where(y > 0, y, NEG_SLOPE * y)
    return y.reshape(mb, ns, -1)


if __name__ == "__main__":
    # Shapes consistent with DPGN usage: P2DAgg(in_c=2*num_sample, out_c=num_sample)
    meta_batch = 2
    num_sample = 8
    out_c = 8
    in_c = 16  # out_c (from point_edge slice) + distribution_node feature dim

    key = jax.random.PRNGKey(0)
    k1, k2, k3, k4 = jax.random.split(key, 4)

    # point_edge: (mb, ns, ns) adjacency-like tensor; only first out_c cols are used
    point_edge = jax.random.normal(k1, (meta_batch, num_sample, num_sample), jnp.float32)
    distribution_node = jax.random.normal(
        k2, (meta_batch, num_sample, in_c - out_c), jnp.float32
    )

    # Deterministic Linear(in_c, out_c) params (stored pre-transposed: (in_c, out_c))
    limit = 1.0 / jnp.sqrt(jnp.float32(in_c))
    w_t = jax.random.uniform(k3, (in_c, out_c), jnp.float32, -limit, limit)
    bias = jax.random.uniform(k4, (out_c,), jnp.float32, -limit, limit)

    out = p2d_agg(point_edge, distribution_node, w_t, bias, out_c)
    out = jax.block_until_ready(out)

    ref = _reference(point_edge, distribution_node, w_t, bias, out_c)
    assert out.shape == (meta_batch, num_sample, out_c)
    assert jnp.allclose(out, ref, atol=1e-5, rtol=1e-5)

    print("KERNEL_OK")
</pallas_src>

<mosaic_0001>
module attributes {stable_mosaic.version = 11 : i64} {
  func.func @_p2d_kernel(%arg0: i32, %arg1: memref<1x128xf32, #tpu.memory_space<vmem>>, %arg2: memref<1x128xf32, #tpu.memory_space<vmem>>, %arg3: memref<128x128xf32, #tpu.memory_space<vmem>>, %arg4: memref<128x128xf32, #tpu.memory_space<vmem>>, %arg5: memref<1x128xf32, #tpu.memory_space<vmem>>, %arg6: memref<1x128xf32, #tpu.memory_space<vmem>>) attributes {dimension_semantics = [#tpu.dimension_semantics<parallel>], iteration_bounds = array<i64: 1>, scalar_prefetch = 0 : i64, scratch_operands = 0 : i64, tpu.core_type = #tpu.core_type<tc>, window_params = [{transform_indices = @transform_0, window_bounds = array<i64: 1, 128>}, {transform_indices = @transform_1, window_bounds = array<i64: 1, 128>}, {pipeline_mode = #tpu.pipeline_mode<synchronous>, transform_indices = @transform_2, window_bounds = array<i64: 128, 128>}, {pipeline_mode = #tpu.pipeline_mode<synchronous>, transform_indices = @transform_3, window_bounds = array<i64: 128, 128>}, {pipeline_mode = #tpu.pipeline_mode<synchronous>, transform_indices = @transform_4, window_bounds = array<i64: 1, 128>}, {transform_indices = @transform_5, window_bounds = array<i64: 1, 128>}]} {
    %c0 = arith.constant 0 : index
    %c0_0 = arith.constant 0 : index
    %0 = vector.load %arg1[%c0, %c0_0] : memref<1x128xf32, #tpu.memory_space<vmem>>, vector<1x128xf32>
    %c0_1 = arith.constant 0 : index
    %c0_2 = arith.constant 0 : index
    %1 = vector.load %arg3[%c0_1, %c0_2] : memref<128x128xf32, #tpu.memory_space<vmem>>, vector<128x128xf32>
    %cst = arith.constant dense<0.000000e+00> : vector<1x128xf32>
    %2 = tpu.matmul %0, %1, %cst {dimension_numbers = #tpu.dot_dimension_numbers<[1], [0], [0], [1], [0, 0, 1, 1], [], []>} : vector<1x128xf32>, vector<128x128xf32>, vector<1x128xf32> -> vector<1x128xf32>
    %c0_3 = arith.constant 0 : index
    %c0_4 = arith.constant 0 : index
    %3 = vector.load %arg2[%c0_3, %c0_4] : memref<1x128xf32, #tpu.memory_space<vmem>>, vector<1x128xf32>
    %c0_5 = arith.constant 0 : index
    %c0_6 = arith.constant 0 : index
    %4 = vector.load %arg4[%c0_5, %c0_6] : memref<128x128xf32, #tpu.memory_space<vmem>>, vector<128x128xf32>
    %cst_7 = arith.constant dense<0.000000e+00> : vector<1x128xf32>
    %5 = tpu.matmul %3, %4, %cst_7 {dimension_numbers = #tpu.dot_dimension_numbers<[1], [0], [0], [1], [0, 0, 1, 1], [], []>} : vector<1x128xf32>, vector<128x128xf32>, vector<1x128xf32> -> vector<1x128xf32>
    %6 = arith.addf %2, %5 : vector<1x128xf32>
    %c0_8 = arith.constant 0 : index
    %c0_9 = arith.constant 0 : index
    %7 = vector.load %arg5[%c0_8, %c0_9] : memref<1x128xf32, #tpu.memory_space<vmem>>, vector<1x128xf32>
    %8 = arith.addf %6, %7 : vector<1x128xf32>
    %cst_10 = arith.constant 0.000000e+00 : f32
    %9 = vector.broadcast %cst_10 : f32 to vector<1x128xf32>
    %10 = arith.cmpf ogt, %8, %9 : vector<1x128xf32>
    %cst_11 = arith.constant 0.00999999977 : f32
    %11 = vector.broadcast %cst_11 : f32 to vector<1x128xf32>
    %12 = arith.mulf %11, %8 : vector<1x128xf32>
    %13 = arith.select %10, %8, %12 : vector<1x128xi1>, vector<1x128xf32>
    %c0_12 = arith.constant 0 : index
    %c0_13 = arith.constant 0 : index
    %14 = vector.load %arg6[%c0_12, %c0_13] : memref<1x128xf32, #tpu.memory_space<vmem>>, vector<1x128xf32>
    tpu.vector_store %arg6[%c0_12, %c0_13], %13 {strides = array<i32>} : memref<1x128xf32, #tpu.memory_space<vmem>>, vector<1x128xf32>,
    return
  }
  func.func @transform_0(%arg0: i32) -> (i32, i32) {
    %c0_i32 = arith.constant 0 : i32
    %c0_i32_0 = arith.constant 0 : i32
    return %arg0, %c0_i32 : i32, i32
  }
  func.func @transform_1(%arg0: i32) -> (i32, i32) {
    %c0_i32 = arith.constant 0 : i32
    %c0_i32_0 = arith.constant 0 : i32
    return %arg0, %c0_i32 : i32, i32
  }
  func.func @transform_2(%arg0: i32) -> (i32, i32) {
    %c0_i32 = arith.constant 0 : i32
    %c0_i32_0 = arith.constant 0 : i32
    %c0_i32_1 = arith.constant 0 : i32
    return %c0_i32, %c0_i32_0 : i32, i32
  }
  func.func @transform_3(%arg0: i32) -> (i32, i32) {
    %c0_i32 = arith.constant 0 : i32
    %c0_i32_0 = arith.constant 0 : i32
    %c0_i32_1 = arith.constant 0 : i32
    return %c0_i32, %c0_i32_0 : i32, i32
  }
  func.func @transform_4(%arg0: i32) -> (i32, i32) {
    %c0_i32 = arith.constant 0 : i32
    %c0_i32_0 = arith.constant 0 : i32
    %c0_i32_1 = arith.constant 0 : i32
    return %c0_i32, %c0_i32_0 : i32, i32
  }
  func.func @transform_5(%arg0: i32) -> (i32, i32) {
    %c0_i32 = arith.constant 0 : i32
    %c0_i32_0 = arith.constant 0 : i32
    return %arg0, %c0_i32 : i32, i32
  }
}

</mosaic_0001>

<llo_original>
// kernel: tpu_custom_call.1
$region0: #{tpu_custom_call.1}
  #allocation0 [shape = 'u32[]', space=smem, size = 0x4, offset = 0x4, fixed_abs, tag = 'smem constant byte address 0x4 - core index']
  #allocation1 [shape = 'u32[144,128]{1,0:T(1,128)}', space=vmem, size = 0x12000, scoped, tag = 'internal scratch']
  %s0 = inlined_call_operand.hbm [shape: f32[1,128], index: 0, kind: input, shape index: {}]
  %s1 = inlined_call_operand.vmem [shape: f32[1,128], index: 1, kind: input, shape index: {}]
  %s2 = inlined_call_operand.hbm [shape: f32[128,128], index: 2, kind: input, shape index: {}]
  %s3 = inlined_call_operand.hbm [shape: f32[128,128], index: 3, kind: input, shape index: {}]
  %s4 = inlined_call_operand.vmem [shape: f32[1,128], index: 4, kind: input, shape index: {}]
  %s5 = inlined_call_operand.hbm [shape: f32[1,128], index: 5, kind: output, shape index: {}]
  %s6 = sld [smem:[#allocation0]]
  $region42: #{tpu_custom_call.1} parent=0
    _
  %s8 = ssub.s32 1, %s6
  %s9 = scalar_select 0, %s8, %s6
  $region1: #{tpu_custom_call.1} parent=0
    #allocation2 [shape = 'u8[512]{0}', space=vmem, size = 0x400, scoped, tag = 'input window, operand 0, single buffered']
    #allocation3 [shape = 's32[1]{0}', space=sflag, size = 0x4, scoped, tag = 'scoped memory for tpu_custom_call.1']
    #allocation4 [shape = 's32[1]{0}', space=sflag, size = 0x4, scoped, tag = 'scoped memory for tpu_custom_call.1']
    #allocation5 [shape = 'u8[65536]{0}', space=vmem, size = 0x10000, scoped, tag = 'input window, operand 2, single buffered']
    #allocation6 [shape = 's32[1]{0}', space=sflag, size = 0x4, scoped, tag = 'scoped memory for tpu_custom_call.1']
    #allocation7 [shape = 'u8[65536]{0}', space=vmem, size = 0x10000, scoped, tag = 'input window, operand 3, single buffered']
    #allocation8 [shape = 'u8[512]{0}', space=vmem, size = 0x400, scoped, tag = 'output window, operand 0, single buffered']
    %10 = vsyncpa [#allocation3], 0
    %11 = vsyncpa [#allocation6], 0
    %12 = vsyncpa [#allocation4], 0
    // Predicated region
    $region2: #{tpu_custom_call.1} parent=1 // pred_check
      _
    $region3: #{tpu_custom_call.1} parent=1 // pred_check_branch
      %14 = sbr.rel (0) target = $region5
    $region4: #{tpu_custom_call.1} parent=1 // pred_region
      %s16 = ssub.s32 16, 16
      %17 = vsyncadd [#allocation3], %s16
      %s19 = sshll.u32 [#allocation2], 4
      %s20 = int_to_ptr.vmem [resolvable:$true] %s19
      %22 = dma.hbm_to_vmem [thread:$0]  %s0, 16, %s20, [#allocation3]
    $region5: #{tpu_custom_call.1} parent=1 // pred_fallthru
      _
    // Predicated region
    $region6: #{tpu_custom_call.1} parent=1 // pred_check
      _
    $region7: #{tpu_custom_call.1} parent=1 // pred_check_branch
      %24 = sbr.rel (0) target = $region9
    $region8: #{tpu_custom_call.1} parent=1 // pred_region
      _
    $region9: #{tpu_custom_call.1} parent=1 // pred_fallthru
      _
    // Predicated region
    $region10: #{tpu_custom_call.1} parent=1 // pred_check
      _
    $region11: #{tpu_custom_call.1} parent=1 // pred_check_branch
      %26 = sbr.rel (0) target = $region13
    $region12: #{tpu_custom_call.1} parent=1 // pred_region
      %s28 = ssub.s32 2048, 2048
      %29 = vsyncadd [#allocation6], %s28
      %s30 = sshll.u32 [#allocation5], 4
      %s31 = int_to_ptr.vmem [resolvable:$true] %s30
      %36 = dma.hbm_to_vmem [thread:$0]  %s2, 2048, %s31, [#allocation6], 128, 128, 8
    $region13: #{tpu_custom_call.1} parent=1 // pred_fallthru
      _
    // Predicated region
    $region14: #{tpu_custom_call.1} parent=1 // pred_check
      _
    $region15: #{tpu_custom_call.1} parent=1 // pred_check_branch
      %38 = sbr.rel (0) target = $region17
    $region16: #{tpu_custom_call.1} parent=1 // pred_region
      %s40 = ssub.s32 2048, 2048
      %41 = vsyncadd [#allocation6], %s40
      %s42 = sshll.u32 [#allocation7], 4
      %s43 = int_to_ptr.vmem [resolvable:$true] %s42
      %48 = dma.hbm_to_vmem [thread:$0]  %s3, 2048, %s43, [#allocation6], 128, 128, 8
    $region17: #{tpu_custom_call.1} parent=1 // pred_fallthru
      _
    // Predicated region
    $region18: #{tpu_custom_call.1} parent=1 // pred_check
      _
    $region19: #{tpu_custom_call.1} parent=1 // pred_check_branch
      %50 = sbr.rel (0) target = $region21
    $region20: #{tpu_custom_call.1} parent=1 // pred_region
      _
    $region21: #{tpu_custom_call.1} parent=1 // pred_fallthru
      _
    // Predicated region
    $region22: #{tpu_custom_call.1} parent=1 // pred_check
      _
    $region23: #{tpu_custom_call.1} parent=1 // pred_check_branch
      %52 = sbr.rel (0) target = $region25
    $region24: #{tpu_custom_call.1} parent=1 // pred_region
      %53 = dma.done [#allocation3], 16
    $region25: #{tpu_custom_call.1} parent=1 // pred_fallthru
      _
    // Predicated region
    $region26: #{tpu_custom_call.1} parent=1 // pred_check
      _
    $region27: #{tpu_custom_call.1} parent=1 // pred_check_branch
      %55 = sbr.rel (0) target = $region29
    $region28: #{tpu_custom_call.1} parent=1 // pred_region
      %56 = dma.done [#allocation6], 2048
    $region29: #{tpu_custom_call.1} parent=1 // pred_fallthru
      _
    // Predicated region
    $region30: #{tpu_custom_call.1} parent=1 // pred_check
      _
    $region31: #{tpu_custom_call.1} parent=1 // pred_check_branch
      %58 = sbr.rel (0) target = $region33
    $region32: #{tpu_custom_call.1} parent=1 // pred_region
      %59 = dma.done [#allocation6], 2048
    $region33: #{tpu_custom_call.1} parent=1 // pred_fallthru
      _
    %v60 = vld [vmem:[#allocation2] sm:$0x1]
    %v61 = vld [vmem:[#allocation5] sm:$0xff]
    %v62 = vld [vmem:[#allocation5 + $0x8] sm:$0xff]
    %v63 = vld [vmem:[#allocation5 + $0x10] sm:$0xff]
    %v64 = vld [vmem:[#allocation5 + $0x18] sm:$0xff]
    %v65 = vld [vmem:[#allocation5 + $0x20] sm:$0xff]
    %v66 = vld [vmem:[#allocation5 + $0x28] sm:$0xff]
    %v67 = vld [vmem:[#allocation5 + $0x30] sm:$0xff]
    %v68 = vld [vmem:[#allocation5 + $0x38] sm:$0xff]
    %v69 = vld [vmem:[#allocation5 + $0x40] sm:$0xff]
    %v70 = vld [vmem:[#allocation5 + $0x48] sm:$0xff]
    %v71 = vld [vmem:[#allocation5 + $0x50] sm:$0xff]
    %v72 = vld [vmem:[#allocation5 + $0x58] sm:$0xff]
    %v73 = vld [vmem:[#allocation5 + $0x60] sm:$0xff]
    %v74 = vld [vmem:[#allocation5 + $0x68] sm:$0xff]
    %v75 = vld [vmem:[#allocation5 + $0x70] sm:$0xff]
    %v76 = vld [vmem:[#allocation5 + $0x78] sm:$0xff]
    %v77 = vld [vmem:[%s1] sm:$0x1]
    %v78 = vld [vmem:[#allocation7] sm:$0xff]
    %v79 = vld [vmem:[#allocation7 + $0x8] sm:$0xff]
    %v80 = vld [vmem:[#allocation7 + $0x10] sm:$0xff]
    %v81 = vld [vmem:[#allocation7 + $0x18] sm:$0xff]
    %v82 = vld [vmem:[#allocation7 + $0x20] sm:$0xff]
    %v83 = vld [vmem:[#allocation7 + $0x28] sm:$0xff]
    %v84 = vld [vmem:[#allocation7 + $0x30] sm:$0xff]
    %v85 = vld [vmem:[#allocation7 + $0x38] sm:$0xff]
    %v86 = vld [vmem:[#allocation7 + $0x40] sm:$0xff]
    %v87 = vld [vmem:[#allocation7 + $0x48] sm:$0xff]
    %v88 = vld [vmem:[#allocation7 + $0x50] sm:$0xff]
    %v89 = vld [vmem:[#allocation7 + $0x58] sm:$0xff]
    %v90 = vld [vmem:[#allocation7 + $0x60] sm:$0xff]
    %v91 = vld [vmem:[#allocation7 + $0x68] sm:$0xff]
    %v92 = vld [vmem:[#allocation7 + $0x70] sm:$0xff]
    %v93 = vld [vmem:[#allocation7 + $0x78] sm:$0xff]
    %94 = vmatprep.subr.mxu0 0.0
    %95 = vmatpush1.msra.mxu0 %v78
    %96 = vmatprep.subr.mxu0 0.0
    %97 = vmatpush1.msra.mxu0 %v79
    %98 = vmatprep.subr.mxu0 0.0
    %99 = vmatpush1.msra.mxu0 %v80
    %100 = vmatprep.subr.mxu0 0.0
    %101 = vmatpush1.msra.mxu0 %v81
    %102 = vmatprep.subr.mxu0 0.0
    %103 = vmatpush1.msra.mxu0 %v82
    %104 = vmatprep.subr.mxu0 0.0
    %105 = vmatpush1.msra.mxu0 %v83
    %106 = vmatprep.subr.mxu0 0.0
    %107 = vmatpush1.msra.mxu0 %v84
    %108 = vmatprep.subr.mxu0 0.0
    %109 = vmatpush1.msra.mxu0 %v85
    %110 = vmatprep.subr.mxu0 0.0
    %111 = vmatpush1.msra.mxu0 %v86
    %112 = vmatprep.subr.mxu0 0.0
    %113 = vmatpush1.msra.mxu0 %v87
    %114 = vmatprep.subr.mxu0 0.0
    %115 = vmatpush1.msra.mxu0 %v88
    %116 = vmatprep.subr.mxu0 0.0
    %117 = vmatpush1.msra.mxu0 %v89
    %118 = vmatprep.subr.mxu0 0.0
    %119 = vmatpush1.msra.mxu0 %v90
    %120 = vmatprep.subr.mxu0 0.0
    %121 = vmatpush1.msra.mxu0 %v91
    %122 = vmatprep.subr.mxu0 0.0
    %123 = vmatpush1.msra.mxu0 %v92
    %124 = vmatprep.subr.mxu0 0.0
    %125 = vmatpush1.msra.mxu0 %v93
    %126 = vmatprep.subr.mxu0 0.0
    %127 = vmatpush1.msra.mxu0 0.0
    %128 = vmatprep.subr.mxu0 0.0
    %129 = vmatpush1.msra.mxu0 0.0
    %130 = vmatprep.subr.mxu0 0.0
    %131 = vmatpush1.msra.mxu0 0.0
    %132 = vmatprep.subr.mxu0 0.0
    %133 = vmatpush1.msra.mxu0 0.0
    %134 = vmatprep.subr.mxu0 0.0
    %135 = vmatpush1.msra.mxu0 0.0
    %136 = vmatprep.subr.mxu0 0.0
    %137 = vmatpush1.msra.mxu0 0.0
    %138 = vmatprep.subr.mxu0 0.0
    %139 = vmatpush1.msra.mxu0 0.0
    %140 = vmatprep.subr.mxu0 0.0
    %141 = vmatpush1.msra.mxu0 0.0
    %142 = vmatprep.subr.mxu0 0.0
    %143 = vmatpush1.msra.mxu0 0.0
    %144 = vmatprep.subr.mxu0 0.0
    %145 = vmatpush1.msra.mxu0 0.0
    %146 = vmatprep.subr.mxu0 0.0
    %147 = vmatpush1.msra.mxu0 0.0
    %148 = vmatprep.subr.mxu0 0.0
    %149 = vmatpush1.msra.mxu0 0.0
    %150 = vmatprep.subr.mxu0 0.0
    %151 = vmatpush1.msra.mxu0 0.0
    %152 = vmatprep.subr.mxu0 0.0
    %153 = vmatpush1.msra.mxu0 0.0
    %154 = vmatprep.subr.mxu0 0.0
    %155 = vmatpush1.msra.mxu0 0.0
    %156 = vmatprep.subr.mxu0 0.0
    %157 = vmatpush1.msra.mxu0 0.0
    %158 = vmatprep.mubr.f32.mxu0 0.0
    %159 = vmatmul.mubr.f32.gmra.mrb[0].mxu0 %v77
    %v160 = vpop.f32.mrb[0].mxu0
    %v161 = vadd.f32 0.0, %v160
    %v162 = vpop.f32.mrb[0].mxu0
    %163 = vdwg.mxu0
    %164 = vmatprep.subr.mxu0 0.0
    %165 = vmatpush1.msra.mxu0 %v61
    %166 = vmatprep.subr.mxu0 0.0
    %167 = vmatpush1.msra.mxu0 %v62
    %168 = vmatprep.subr.mxu0 0.0
    %169 = vmatpush1.msra.mxu0 %v63
    %170 = vmatprep.subr.mxu0 0.0
    %171 = vmatpush1.msra.mxu0 %v64
    %172 = vmatprep.subr.mxu0 0.0
    %173 = vmatpush1.msra.mxu0 %v65
    %174 = vmatprep.subr.mxu0 0.0
    %175 = vmatpush1.msra.mxu0 %v66
    %176 = vmatprep.subr.mxu0 0.0
    %177 = vmatpush1.msra.mxu0 %v67
    %178 = vmatprep.subr.mxu0 0.0
    %179 = vmatpush1.msra.mxu0 %v68
    %180 = vmatprep.subr.mxu0 0.0
    %181 = vmatpush1.msra.mxu0 %v69
    %182 = vmatprep.subr.mxu0 0.0
    %183 = vmatpush1.msra.mxu0 %v70
    %184 = vmatprep.subr.mxu0 0.0
    %185 = vmatpush1.msra.mxu0 %v71
    %186 = vmatprep.subr.mxu0 0.0
    %187 = vmatpush1.msra.mxu0 %v72
    %188 = vmatprep.subr.mxu0 0.0
    %189 = vmatpush1.msra.mxu0 %v73
    %190 = vmatprep.subr.mxu0 0.0
    %191 = vmatpush1.msra.mxu0 %v74
    %192 = vmatprep.subr.mxu0 0.0
    %193 = vmatpush1.msra.mxu0 %v75
    %194 = vmatprep.subr.mxu0 0.0
    %195 = vmatpush1.msra.mxu0 %v76
    %196 = vmatprep.subr.mxu0 0.0
    %197 = vmatpush1.msra.mxu0 0.0
    %198 = vmatprep.subr.mxu0 0.0
    %199 = vmatpush1.msra.mxu0 0.0
    %200 = vmatprep.subr.mxu0 0.0
    %201 = vmatpush1.msra.mxu0 0.0
    %202 = vmatprep.subr.mxu0 0.0
    %203 = vmatpush1.msra.mxu0 0.0
    %204 = vmatprep.subr.mxu0 0.0
    %205 = vmatpush1.msra.mxu0 0.0
    %206 = vmatprep.subr.mxu0 0.0
    %207 = vmatpush1.msra.mxu0 0.0
    %208 = vmatprep.subr.mxu0 0.0
    %209 = vmatpush1.msra.mxu0 0.0
    %210 = vmatprep.subr.mxu0 0.0
    %211 = vmatpush1.msra.mxu0 0.0
    %212 = vmatprep.subr.mxu0 0.0
    %213 = vmatpush1.msra.mxu0 0.0
    %214 = vmatprep.subr.mxu0 0.0
    %215 = vmatpush1.msra.mxu0 0.0
    %216 = vmatprep.subr.mxu0 0.0
    %217 = vmatpush1.msra.mxu0 0.0
    %218 = vmatprep.subr.mxu0 0.0
    %219 = vmatpush1.msra.mxu0 0.0
    %220 = vmatprep.subr.mxu0 0.0
    %221 = vmatpush1.msra.mxu0 0.0
    %222 = vmatprep.subr.mxu0 0.0
    %223 = vmatpush1.msra.mxu0 0.0
    %224 = vmatprep.subr.mxu0 0.0
    %225 = vmatpush1.msra.mxu0 0.0
    %226 = vmatprep.subr.mxu0 0.0
    %227 = vmatpush1.msra.mxu0 0.0
    %228 = vmatprep.mubr.f32.mxu0 0.0
    %229 = vmatmul.mubr.f32.gmra.mrb[0].mxu0 %v60
    %v230 = vpop.f32.mrb[0].mxu0
    %v231 = vadd.f32 %v161, %v230
    %v232 = vpop.f32.mrb[0].mxu0
    %233 = vdwg.mxu0
    %v234 = vld [vmem:[%s4] sm:$0x1]
    %v235 = vadd.f32 %v231, %v234
    %vm236 = vcmp.gt.f32.partialorder %v235, 0.0
    %v237 = vmul.f32 %v235, 0.01
    %v238 = vsel %vm236, %v235, %v237
    %239 = vst [vmem:[#allocation8] sm:$0x1] %v238
    // Predicated region
    $region34: #{tpu_custom_call.1} parent=1 // pred_check
      _
    $region35: #{tpu_custom_call.1} parent=1 // pred_check_branch
      %241 = sbr.rel (0) target = $region37
    $region36: #{tpu_custom_call.1} parent=1 // pred_region
      %s243 = ssub.s32 16, 16
      %244 = vsyncadd [#allocation4], %s243
      %s246 = sshll.u32 [#allocation8], 4
      %s247 = int_to_ptr.vmem [resolvable:$true] %s246
      %249 = dma.vmem_to_hbm [thread:$0]  %s247, 16, %s5, [#allocation4]
    $region37: #{tpu_custom_call.1} parent=1 // pred_fallthru
      _
    // Predicated region
    $region38: #{tpu_custom_call.1} parent=1 // pred_check
      _
    $region39: #{tpu_custom_call.1} parent=1 // pred_check_branch
      %251 = sbr.rel (0) target = $region41
    $region40: #{tpu_custom_call.1} parent=1 // pred_region
      %252 = dma.done [#allocation4], 16
    $region41: #{tpu_custom_call.1} parent=1 // pred_fallthru
      _
    %253 = vsyncpa [#allocation3], 1
    %254 = vsyncpa [#allocation6], 1
    %255 = vsyncpa [#allocation4], 1

</llo_original>
